<compile_context>
chip_gen: v6e
topology: v6e:2x2x1
jax: 0.10.0
libtpu: 0.0.40
codegen_flags: <defaults>
</compile_context>

<pallas_src>
import functools

import jax
import jax.numpy as jnp
from jax.experimental import pallas as pl
from jax.experimental.pallas import tpu as pltpu


LANE = 128                                # channel padding -> lane-dense stores
VMEM_LIMIT_BYTES = 48 * 1024 * 1024       # safe on v7x (64 MiB) and v5e/v6e (128 MiB)
H_RESIDENT_BUDGET = 12 * 1024 * 1024      # keep H fully VMEM-resident below this


def _pad_to(c, m):
    return ((c + m - 1) // m) * m


def _cdiv(a, b):
    return (a + b - 1) // b


def _choose_tiles(n):
    """Fixed power-of-two tiles; N is padded up to a tile multiple by the caller.

    1024-wide tiles keep the mem-bound aggregate near the HBM roofline (per-step
    overhead ~0.35 us dominates at 512 tiles on v7x's 3.2 TB/s).  The row tile is
    shrunk only to guarantee >= 2 parallel row blocks so both v7x TensorCores work.
    """
    row_tile = 1024
    while row_tile > 128 and _cdiv(n, row_tile) < 2:
        row_tile //= 2
    k_tile = 1024
    while k_tile > 128 and k_tile > n:      # don't over-pad the reduction axis
        k_tile //= 2
    n_pad = _pad_to(n, max(row_tile, k_tile))   # both are powers of two >= 128
    return row_tile, k_tile, n_pad


# ---------------------------------------------------------------------------
# One-time graph preparation (hoisted out of the per-forward path)
# ---------------------------------------------------------------------------
def prepare_graph(adj):
    """Pad adj, pack to int8 (0/1 is exact), precompute inv_deg once."""
    n = adj.shape[0]
    row_tile, k_tile, n_pad = _choose_tiles(n)
    adj_f = adj.astype(jnp.float32)
    deg = jnp.sum(adj_f, axis=1, keepdims=True)
    inv_deg = 1.0 / jnp.maximum(deg, 1.0)                       # precomputed reciprocal
    adj_i8 = jnp.pad(adj_f, ((0, n_pad - n), (0, n_pad - n))).astype(jnp.int8)
    inv_deg_p = jnp.pad(inv_deg, ((0, n_pad - n), (0, 0)), constant_values=1.0)
    return {
        "adj": adj_i8, "inv_deg": inv_deg_p,
        "n": n, "n_pad": n_pad, "row_tile": row_tile, "k_tile": k_tile,
    }


# ---------------------------------------------------------------------------
# Kernel 1: per-layer feature transform  Y = X @ [W_l | W_r];  H, R = split(Y)
# ---------------------------------------------------------------------------
def _sage_transform_kernel(x_ref, w_ref, b_ref, h_ref, r_ref, *, c_out):
    y = jnp.dot(x_ref[...], w_ref[...], preferred_element_type=jnp.float32)
    h_ref[...] = y[:, :c_out].astype(h_ref.dtype)                 # neighbor message
    r_ref[...] = (y[:, c_out:] + b_ref[...]).astype(r_ref.dtype)  # root/self + bias


def sage_transform(x, w_cat, b, row_tile):
    n, c_in = x.shape
    c_out2 = w_cat.shape[1]
    c_out = c_out2 // 2
    grid = (n // row_tile,)
    kernel = functools.partial(_sage_transform_kernel, c_out=c_out)
    cost = pl.CostEstimate(
        flops=2 * n * c_in * c_out2,
        transcendentals=0,
        bytes_accessed=(x.size * x.dtype.itemsize
                        + w_cat.size * w_cat.dtype.itemsize
                        + 2 * n * c_out * x.dtype.itemsize))
    return pl.pallas_call(
        kernel,
        out_shape=(jax.ShapeDtypeStruct((n, c_out), x.dtype),
                   jax.ShapeDtypeStruct((n, c_out), x.dtype)),
        grid_spec=pltpu.PrefetchScalarGridSpec(
            num_scalar_prefetch=0,
            grid=grid,
            in_specs=[
                pl.BlockSpec((row_tile, c_in), lambda i: (i, 0)),   # X row tile
                pl.BlockSpec((c_in, c_out2), lambda i: (0, 0)),     # [W_l|W_r] resident
                pl.BlockSpec((1, c_out), lambda i: (0, 0)),         # bias
            ],
            out_specs=[
                pl.BlockSpec((row_tile, c_out), lambda i: (i, 0)),  # H
                pl.BlockSpec((row_tile, c_out), lambda i: (i, 0)),  # R
            ]),
        compiler_params=pltpu.CompilerParams(
            dimension_semantics=("parallel",),
            vmem_limit_bytes=VMEM_LIMIT_BYTES),
        cost_estimate=cost,
    )(x, w_cat, b)


# ---------------------------------------------------------------------------
# Kernel 2: neighborhood aggregation  out = (A @ H) * inv_deg + R  [, relu]
# ---------------------------------------------------------------------------
def _sage_aggregate_kernel(adj_ref, h_ref, inv_deg_ref, r_ref, o_ref, acc_ref, *,
                           apply_relu, h_resident, k_tile):
    k = pl.program_id(1)

    @pl.when(k == 0)
    def _():
        acc_ref[...] = jnp.zeros_like(acc_ref)

    # int8 (0/1) -> bf16 upcast on the VPU; MXU sees bf16 everywhere (v7x-safe).
    a = adj_ref[...].astype(jnp.bfloat16)
    if h_resident:
        start = pl.multiple_of(k * k_tile, k_tile)
        h_blk = h_ref[pl.ds(start, k_tile), :]       # H fully VMEM-resident
    else:
        h_blk = h_ref[...]                           # streamed k-slab
    acc_ref[...] += jnp.dot(a, h_blk, preferred_element_type=jnp.float32)

    @pl.when(k == pl.num_programs(1) - 1)
    def _():
        y = acc_ref[...] * inv_deg_ref[...]          # mean via precomputed reciprocal
        y = y + r_ref[...].astype(jnp.float32)       # root term (+bias)
        if apply_relu:
            y = jnp.maximum(y, 0.0)
        o_ref[...] = y.astype(o_ref.dtype)


def sage_aggregate(adj, h, inv_deg, r, *, row_tile, k_tile, apply_relu,
                   force_stream_h=False):
    n = adj.shape[0]
    c_out = h.shape[1]
    h_resident = (not force_stream_h) and (h.size * h.dtype.itemsize
                                           <= H_RESIDENT_BUDGET)
    grid = (n // row_tile, n // k_tile)
    kernel = functools.partial(_sage_aggregate_kernel, apply_relu=apply_relu,
                               h_resident=h_resident, k_tile=k_tile)
    if h_resident:
        h_spec = pl.BlockSpec((n, c_out), lambda i, k: (0, 0))       # resident
    else:
        h_spec = pl.BlockSpec((k_tile, c_out), lambda i, k: (k, 0))  # streamed
    # TODO(synk): if profiles show exposed adj DMA latency on v7x, add
    # pipeline_mode=pl.Buffered(3) to the adj BlockSpec.
    cost = pl.CostEstimate(
        flops=2 * n * n * c_out,
        transcendentals=0,
        bytes_accessed=(adj.size * adj.dtype.itemsize
                        + (h.size + r.size) * h.dtype.itemsize
                        + inv_deg.size * inv_deg.dtype.itemsize
                        + n * c_out * h.dtype.itemsize))
    return pl.pallas_call(
        kernel,
        out_shape=jax.ShapeDtypeStruct((n, c_out), h.dtype),
        grid_spec=pltpu.PrefetchScalarGridSpec(
            num_scalar_prefetch=0,
            grid=grid,
            in_specs=[
                pl.BlockSpec((row_tile, k_tile), lambda i, k: (i, k)),  # adj tile (int8)
                h_spec,                                                 # H
                pl.BlockSpec((row_tile, 1), lambda i, k: (i, 0)),       # inv_deg (resident/k)
                pl.BlockSpec((row_tile, c_out), lambda i, k: (i, 0)),   # R (resident/k)
            ],
            out_specs=pl.BlockSpec((row_tile, c_out), lambda i, k: (i, 0)),
            scratch_shapes=[pltpu.VMEM((row_tile, c_out), jnp.float32)]),
        compiler_params=pltpu.CompilerParams(
            dimension_semantics=("parallel", "arbitrary"),
            vmem_limit_bytes=VMEM_LIMIT_BYTES),
        cost_estimate=cost,
    )(adj, h, inv_deg, r)


# ---------------------------------------------------------------------------
# Model forward
# ---------------------------------------------------------------------------
def sage_forward(x, graph, params, dropout_p=0.5, force_stream_h=False):
    """Mirrors SAGE.forward: SAGEConv -> relu -> dropout(eval) per hidden layer."""
    num_layers = len(params)
    cd = jnp.bfloat16
    n, n_pad = graph["n"], graph["n_pad"]
    row_tile, k_tile = graph["row_tile"], graph["k_tile"]
    adj_i8, inv_deg = graph["adj"], graph["inv_deg"]

    c_in0 = x.shape[1]
    c_in0_pad = _pad_to(c_in0, LANE)
    h = jnp.pad(x.astype(cd), ((0, n_pad - n), (0, c_in0_pad - c_in0)))

    for i, (w_l, w_r, b) in enumerate(params):
        is_last = i == num_layers - 1
        c_in, c_out = w_l.shape
        c_in_pad, c_out_pad = _pad_to(c_in, LANE), _pad_to(c_out, LANE)
        wl_p = jnp.pad(w_l, ((0, c_in_pad - c_in), (0, c_out_pad - c_out)))
        wr_p = jnp.pad(w_r, ((0, c_in_pad - c_in), (0, c_out_pad - c_out)))
        # Fused [W_l | W_r]: a single 2*c_out-wide RHS fills the MXU and reads
        # the X row tile once per layer.
        w_cat = jnp.concatenate([wl_p, wr_p], axis=1).astype(cd)
        b_p = jnp.pad(b, ((0, 0), (0, c_out_pad - c_out))).astype(jnp.float32)

        h_msg, root = sage_transform(h, w_cat, b_p, row_tile)
        h = sage_aggregate(adj_i8, h_msg, inv_deg, root,
                           row_tile=row_tile, k_tile=k_tile,
                           apply_relu=not is_last,
                           force_stream_h=force_stream_h)
        # F.dropout(x, p=dropout_p, training=False) == identity (inference).
        # TODO(synk): training-mode dropout would use pltpu.prng_seed +
        # pltpu.stateful_bernoulli inside the aggregate epilogue.

    c_out_final = params[-1][0].shape[1]
    return h[:n, :c_out_final]


def init_sage_params(key, in_channels, hidden_channels, out_channels, num_layers):
    """Per SAGEConv: W_l [c_in,c_out] + bias, W_r [c_in,c_out] (no bias)."""
    dims = [in_channels] + [hidden_channels] * (num_layers - 1) + [out_channels]
    params = []
    for i in range(num_layers):
        c_in, c_out = dims[i], dims[i + 1]
        key, k1, k2, k3 = jax.random.split(key, 4)
        limit = (6.0 / (c_in + c_out)) ** 0.5
        w_l = jax.random.uniform(k1, (c_in, c_out), jnp.float32, -limit, limit)
        w_r = jax.random.uniform(k2, (c_in, c_out), jnp.float32, -limit, limit)
        b = jax.random.uniform(k3, (1, c_out), jnp.float32, -0.1, 0.1)
        params.append((w_l, w_r, b))
    return params


def sage_reference(x, adj, params):
    """Pure-JAX reference mirroring the kernels' bf16/f32 dtype pipeline."""
    cd = jnp.bfloat16
    adj_c = adj.astype(cd)
    deg = jnp.sum(adj.astype(jnp.float32), axis=1, keepdims=True)
    inv = 1.0 / jnp.maximum(deg, 1.0)
    h = x.astype(cd)
    for i, (w_l, w_r, b) in enumerate(params):
        msg = jnp.dot(h, w_l.astype(cd),
                      preferred_element_type=jnp.float32).astype(cd)
        root = (jnp.dot(h, w_r.astype(cd), preferred_element_type=jnp.float32)
                + b.astype(jnp.float32)).astype(cd)
        y = jnp.dot(adj_c, msg, preferred_element_type=jnp.float32) * inv
        y = y + root.astype(jnp.float32)
        if i != len(params) - 1:
            y = jnp.maximum(y, 0.0)
        h = y.astype(cd)
    return h


if __name__ == "__main__":
    key = jax.random.PRNGKey(0)

    # Small synthetic graph; N deliberately NOT a multiple of the tile size so
    # the zero-padding path is exercised, and large enough for >=2 blocks on
    # both grid axes.
    N = 300
    in_channels = 16
    hidden_channels = 64
    out_channels = 8
    num_layers = 3
    dropout = 0.5

    k_x, k_a, k_p = jax.random.split(key, 3)
    x = jax.random.normal(k_x, (N, in_channels), jnp.float32)
    adj = (jax.random.uniform(k_a, (N, N)) < 0.05).astype(jnp.float32)

    params = init_sage_params(k_p, in_channels, hidden_channels,
                              out_channels, num_layers)

    graph = prepare_graph(adj)   # one-time: int8 adj, inv_deg, padding, tiles

    # Default path (H fully VMEM-resident at these sizes).
    out = jax.block_until_ready(sage_forward(x, graph, params, dropout_p=dropout))
    # Also exercise the streamed-H path (used when H exceeds the VMEM budget).
    out_stream = jax.block_until_ready(
        sage_forward(x, graph, params, dropout_p=dropout, force_stream_h=True))

    ref = sage_reference(x, adj, params).astype(jnp.float32)
    assert out.shape == (N, out_channels)
    for o in (out, out_stream):
        o32 = o.astype(jnp.float32)
        err = float(jnp.max(jnp.abs(o32 - ref)))
        assert bool(jnp.allclose(o32, ref, atol=5e-2, rtol=5e-2)), err

    print("KERNEL_OK")
</pallas_src>

<mosaic_0001>
module attributes {stable_mosaic.version = 11 : i64} {
  func.func @_sage_transform_kernel(%arg0: i32, %arg1: memref<256x128xbf16, #tpu.memory_space<vmem>>, %arg2: memref<128x256xbf16, #tpu.memory_space<vmem>>, %arg3: memref<1x128xf32, #tpu.memory_space<vmem>>, %arg4: memref<256x128xbf16, #tpu.memory_space<vmem>>, %arg5: memref<256x128xbf16, #tpu.memory_space<vmem>>) attributes {dimension_semantics = [#tpu.dimension_semantics<parallel>], iteration_bounds = array<i64: 2>, scalar_prefetch = 0 : i64, scratch_operands = 0 : i64, tpu.core_type = #tpu.core_type<tc>, window_params = [{transform_indices = @transform_0, window_bounds = array<i64: 256, 128>}, {pipeline_mode = #tpu.pipeline_mode<synchronous>, transform_indices = @transform_1, window_bounds = array<i64: 128, 256>}, {pipeline_mode = #tpu.pipeline_mode<synchronous>, transform_indices = @transform_2, window_bounds = array<i64: 1, 128>}, {transform_indices = @transform_3, window_bounds = array<i64: 256, 128>}, {transform_indices = @transform_4, window_bounds = array<i64: 256, 128>}]} {
    %c0 = arith.constant 0 : index
    %c0_0 = arith.constant 0 : index
    %0 = vector.load %arg1[%c0, %c0_0] : memref<256x128xbf16, #tpu.memory_space<vmem>>, vector<256x128xbf16>
    %c0_1 = arith.constant 0 : index
    %c0_2 = arith.constant 0 : index
    %1 = vector.load %arg2[%c0_1, %c0_2] : memref<128x256xbf16, #tpu.memory_space<vmem>>, vector<128x256xbf16>
    %cst = arith.constant dense<0.000000e+00> : vector<256x256xf32>
    %2 = tpu.matmul %0, %1, %cst {dimension_numbers = #tpu.dot_dimension_numbers<[1], [0], [0], [1], [0, 0, 1, 1], [], []>} : vector<256x128xbf16>, vector<128x256xbf16>, vector<256x256xf32> -> vector<256x256xf32>
    %3 = vector.extract_strided_slice %2 {offsets = [0, 0], sizes = [256, 128], strides = [1, 1]} : vector<256x256xf32> to vector<256x128xf32>
    %4 = arith.truncf %3 : vector<256x128xf32> to vector<256x128xbf16>
    %c0_3 = arith.constant 0 : index
    %c0_4 = arith.constant 0 : index
    %5 = vector.load %arg4[%c0_3, %c0_4] : memref<256x128xbf16, #tpu.memory_space<vmem>>, vector<256x128xbf16>
    tpu.vector_store %arg4[%c0_3, %c0_4], %4 {strides = array<i32>} : memref<256x128xbf16, #tpu.memory_space<vmem>>, vector<256x128xbf16>,
    %6 = vector.extract_strided_slice %2 {offsets = [0, 128], sizes = [256, 128], strides = [1, 1]} : vector<256x256xf32> to vector<256x128xf32>
    %c0_5 = arith.constant 0 : index
    %c0_6 = arith.constant 0 : index
    %7 = vector.load %arg3[%c0_5, %c0_6] : memref<1x128xf32, #tpu.memory_space<vmem>>, vector<1x128xf32>
    %8 = vector.broadcast %7 : vector<1x128xf32> to vector<256x128xf32>
    %9 = arith.addf %6, %8 : vector<256x128xf32>
    %10 = arith.truncf %9 : vector<256x128xf32> to vector<256x128xbf16>
    %c0_7 = arith.constant 0 : index
    %c0_8 = arith.constant 0 : index
    %11 = vector.load %arg5[%c0_7, %c0_8] : memref<256x128xbf16, #tpu.memory_space<vmem>>, vector<256x128xbf16>
    tpu.vector_store %arg5[%c0_7, %c0_8], %10 {strides = array<i32>} : memref<256x128xbf16, #tpu.memory_space<vmem>>, vector<256x128xbf16>,
    return
  }
  func.func @transform_0(%arg0: i32) -> (i32, i32) {
    %c0_i32 = arith.constant 0 : i32
    %c0_i32_0 = arith.constant 0 : i32
    return %arg0, %c0_i32 : i32, i32
  }
  func.func @transform_1(%arg0: i32) -> (i32, i32) {
    %c0_i32 = arith.constant 0 : i32
    %c0_i32_0 = arith.constant 0 : i32
    %c0_i32_1 = arith.constant 0 : i32
    return %c0_i32, %c0_i32_0 : i32, i32
  }
  func.func @transform_2(%arg0: i32) -> (i32, i32) {
    %c0_i32 = arith.constant 0 : i32
    %c0_i32_0 = arith.constant 0 : i32
    %c0_i32_1 = arith.constant 0 : i32
    return %c0_i32, %c0_i32_0 : i32, i32
  }
  func.func @transform_3(%arg0: i32) -> (i32, i32) {
    %c0_i32 = arith.constant 0 : i32
    %c0_i32_0 = arith.constant 0 : i32
    return %arg0, %c0_i32 : i32, i32
  }
  func.func @transform_4(%arg0: i32) -> (i32, i32) {
    %c0_i32 = arith.constant 0 : i32
    %c0_i32_0 = arith.constant 0 : i32
    return %arg0, %c0_i32 : i32, i32
  }
}

</mosaic_0001>

<llo_original>
// kernel: tpu_custom_call.1
$region0: #{tpu_custom_call.1}
  #allocation0 [shape = 'u32[]', space=smem, size = 0x4, offset = 0x4, fixed_abs, tag = 'smem constant byte address 0x4 - core index']
  #allocation1 [shape = 'u32[144,128]{1,0:T(1,128)}', space=vmem, size = 0x12000, scoped, tag = 'internal scratch']
  %s0 = inlined_call_operand.hbm [shape: bf16[512,128], index: 0, kind: input, shape index: {}]
  %s1 = inlined_call_operand.hbm [shape: bf16[128,256], index: 1, kind: input, shape index: {}]
  %s2 = inlined_call_operand.vmem [shape: f32[1,128], index: 2, kind: input, shape index: {}]
  %s3 = inlined_call_operand.hbm [shape: bf16[512,128], index: 3, kind: output, shape index: {0}]
  %s4 = inlined_call_operand.hbm [shape: bf16[512,128], index: 4, kind: output, shape index: {1}]
  %5 = xla_tuple %s3, %s4
  %s6 = sld [smem:[#allocation0]]
  $region61: #{tpu_custom_call.1} parent=0
    _
  %s8 = ssub.s32 1, %s6
  %s9 = scalar_select 0, %s8, %s6
  $region1: #{tpu_custom_call.1} parent=0
    #allocation2 [shape = 'u8[131072]{0}', space=vmem, size = 0x20000, scoped, tag = 'input window, operand 0']
    #allocation3 [shape = 's32[2]{0}', space=sflag, size = 0x8, scoped, tag = 'scoped memory for tpu_custom_call.1']
    #allocation4 [shape = 's32[2]{0}', space=sflag, size = 0x8, scoped, tag = 'scoped memory for tpu_custom_call.1']
    #allocation5 [shape = 'u8[65536]{0}', space=vmem, size = 0x10000, scoped, tag = 'input window, operand 1, single buffered']
    #allocation6 [shape = 's32[1]{0}', space=sflag, size = 0x4, scoped, tag = 'scoped memory for tpu_custom_call.1']
    #allocation7 [shape = 'u8[131072]{0}', space=vmem, size = 0x20000, scoped, tag = 'output window, operand 0']
    #allocation8 [shape = 'u8[131072]{0}', space=vmem, size = 0x20000, scoped, tag = 'output window, operand 1']
    #allocation9 [shape = 's32[2]{0}', space=sflag, size = 0x8, scoped, tag = 'scoped memory for tpu_custom_call.1']
    %10 = vsyncpa [#allocation3], 0
    %s11 = scalar_lea.sflag [#allocation3], 1
    %12 = vsyncpa %s11, 0
    %13 = vsyncpa [#allocation6], 0
    %14 = vsyncpa [#allocation4], 0
    %s15 = scalar_lea.sflag [#allocation4], 1
    %16 = vsyncpa %s15, 0
    %17 = vsyncpa [#allocation9], 0
    %s18 = scalar_lea.sflag [#allocation9], 1
    %19 = vsyncpa %s18, 0
    loop: start=0, step=1, limit=4
    $region2: #{tpu_custom_call.1} parent=1 // loop_pre_header
      _
    $region3: #{tpu_custom_call.1} parent=1 // loop_header
      %s21 = sphi 0, %s25
      %p22 = scmp.ge.s32.totalorder %s21, 4
      %s31 = sphi 0, %s33
      %s34 = sphi 0, %s31
      %s35 = sphi 0, %s34
      %s51 = sphi 0, %s35
      %s55 = sphi 0, %s55
      %s57 = sphi 0, %s55
      %s58 = sphi 0, %s57
      %s72 = sphi 0, %s58
      %s76 = sphi 0, %s76
      %s78 = sphi 0, %s76
      %s79 = sphi 0, %s78
      %s93 = sphi 0, %s79
      %s99 = sphi 0, %s101
      %s102 = sphi 0, %s99
      %s103 = sphi 0, %s102
      %s119 = sphi 0, %s103
      %s125 = sphi 0, %s127
      %s128 = sphi 0, %s125
      %s129 = sphi 0, %s128
      %s145 = sphi 0, %s129
    $region4: #{tpu_custom_call.1} parent=1 // loop_header_branch
      %24 = sbr.rel (%p22) target = $region8
    $region5: #{tpu_custom_call.1} parent=1 // loop_body
      %s26 = ssub.s32 %s21, 1
      %s27 = ssub.s32 %s21, 2
      %s28 = sadd.s32 %s21, 1
      %s29 = ssub.s32 %s21, %s28
      %p30 = scmp.eq.s32.totalorder %s29, 0
      %s32 = sadd.s32 %s31, 1
      %s33 = scalar_select %p30, %s31, %s32
      %p36 = pneg %p30
      %p37 = scmp.eq.s32.totalorder %s21, 1
      %p38 = por %p36, %p37
      %p39 = scmp.ne.s32.totalorder %s31, %s34
      %p40 = scmp.eq.s32.totalorder %s21, 0
      %p41 = por %p39, %p40
      %p42 = scmp.ne.s32.totalorder %s31, %s34
      %p43 = scmp.eq.s32.totalorder %s26, 1
      %p44 = por %p42, %p43
      %p45 = scmp.ne.s32.totalorder %s34, %s35
      %p46 = scmp.eq.s32.totalorder %s26, 0
      %p47 = por %p45, %p46
      %p48 = scmp.ne.s32.totalorder %s34, %s35
      %p49 = scmp.eq.s32.totalorder %s27, 1
      %p50 = por %p48, %p49
      %p52 = scmp.ne.s32.totalorder %s35, %s51
      %p53 = scmp.eq.s32.totalorder %s27, 0
      %p54 = por %p52, %p53
      %s56 = sadd.s32 %s55, 1
      %p59 = scmp.eq.s32.totalorder %s21, 1
      %p60 = scmp.ne.s32.totalorder %s55, %s57
      %p61 = scmp.eq.s32.totalorder %s21, 0
      %p62 = por %p60, %p61
      %p63 = scmp.ne.s32.totalorder %s55, %s57
      %p64 = scmp.eq.s32.totalorder %s26, 1
      %p65 = por %p63, %p64
      %p66 = scmp.ne.s32.totalorder %s57, %s58
      %p67 = scmp.eq.s32.totalorder %s26, 0
      %p68 = por %p66, %p67
      %p69 = scmp.ne.s32.totalorder %s57, %s58
      %p70 = scmp.eq.s32.totalorder %s27, 1
      %p71 = por %p69, %p70
      %p73 = scmp.ne.s32.totalorder %s58, %s72
      %p74 = scmp.eq.s32.totalorder %s27, 0
      %p75 = por %p73, %p74
      %s77 = sadd.s32 %s76, 1
      %p80 = scmp.eq.s32.totalorder %s21, 1
      %p81 = scmp.ne.s32.totalorder %s76, %s78
      %p82 = scmp.eq.s32.totalorder %s21, 0
      %p83 = por %p81, %p82
      %p84 = scmp.ne.s32.totalorder %s76, %s78
      %p85 = scmp.eq.s32.totalorder %s26, 1
      %p86 = por %p84, %p85
      %p87 = scmp.ne.s32.totalorder %s78, %s79
      %p88 = scmp.eq.s32.totalorder %s26, 0
      %p89 = por %p87, %p88
      %p90 = scmp.ne.s32.totalorder %s78, %s79
      %p91 = scmp.eq.s32.totalorder %s27, 1
      %p92 = por %p90, %p91
      %p94 = scmp.ne.s32.totalorder %s79, %s93
      %p95 = scmp.eq.s32.totalorder %s27, 0
      %p96 = por %p94, %p95
      %s97 = ssub.s32 %s21, %s28
      %p98 = scmp.eq.s32.totalorder %s97, 0
      %s100 = sadd.s32 %s99, 1
      %s101 = scalar_select %p98, %s99, %s100
      %p104 = pneg %p98
      %p105 = scmp.eq.s32.totalorder %s21, 1
      %p106 = por %p104, %p105
      %p107 = scmp.ne.s32.totalorder %s99, %s102
      %p108 = scmp.eq.s32.totalorder %s21, 0
      %p109 = por %p107, %p108
      %p110 = scmp.ne.s32.totalorder %s99, %s102
      %p111 = scmp.eq.s32.totalorder %s26, 1
      %p112 = por %p110, %p111
      %p113 = scmp.ne.s32.totalorder %s102, %s103
      %p114 = scmp.eq.s32.totalorder %s26, 0
      %p115 = por %p113, %p114
      %p116 = scmp.ne.s32.totalorder %s102, %s103
      %p117 = scmp.eq.s32.totalorder %s27, 1
      %p118 = por %p116, %p117
      %p120 = scmp.ne.s32.totalorder %s103, %s119
      %p121 = scmp.eq.s32.totalorder %s27, 0
      %p122 = por %p120, %p121
      %s123 = ssub.s32 %s21, %s28
      %p124 = scmp.eq.s32.totalorder %s123, 0
      %s126 = sadd.s32 %s125, 1
      %s127 = scalar_select %p124, %s125, %s126
      %p130 = pneg %p124
      %p131 = scmp.eq.s32.totalorder %s21, 1
      %p132 = por %p130, %p131
      %p133 = scmp.ne.s32.totalorder %s125, %s128
      %p134 = scmp.eq.s32.totalorder %s21, 0
      %p135 = por %p133, %p134
      %p136 = scmp.ne.s32.totalorder %s125, %s128
      %p137 = scmp.eq.s32.totalorder %s26, 1
      %p138 = por %p136, %p137
      %p139 = scmp.ne.s32.totalorder %s128, %s129
      %p140 = scmp.eq.s32.totalorder %s26, 0
      %p141 = por %p139, %p140
      %p142 = scmp.ne.s32.totalorder %s128, %s129
      %p143 = scmp.eq.s32.totalorder %s27, 1
      %p144 = por %p142, %p143
      %p146 = scmp.ne.s32.totalorder %s129, %s145
      %p147 = scmp.eq.s32.totalorder %s27, 0
      %p148 = por %p146, %p147
      %p149 = scmp.le.s32.totalorder 1, %s21
      %p150 = scmp.lt.s32.totalorder %s21, 3
      %p151 = pnand %p149, %p150
      %p152 = pneg %p151
      // Predicated region
      $region9: #{tpu_custom_call.1} parent=5 // pred_check
        _
      $region10: #{tpu_custom_call.1} parent=5 // pred_check_branch
        %154 = sbr.rel (%p151) target = $region12
      $region11: #{tpu_custom_call.1} parent=5 // pred_region
        %s155 = ssub.s32 %s21, 1
        // Predicated region
        $region13: #{tpu_custom_call.1} parent=11 // pred_check
          %p156 = pneg %p68
        $region14: #{tpu_custom_call.1} parent=11 // pred_check_branch
          %158 = sbr.rel (%p156) target = $region16
        $region15: #{tpu_custom_call.1} parent=11 // pred_region
          %s160 = ssub.s32 2048, 2048
          %161 = vsyncadd [#allocation6], %s160
          %s162 = sshll.u32 [#allocation5], 4
          %s163 = int_to_ptr.vmem [resolvable:$true] %s162
          %168 = dma.hbm_to_vmem [thread:$0]  %s1, 2048, %s163, [#allocation6], 128, 128, 8
        $region16: #{tpu_custom_call.1} parent=11 // pred_fallthru
          _
        // Predicated region
        $region17: #{tpu_custom_call.1} parent=11 // pred_check
          %p169 = pneg %p89
        $region18: #{tpu_custom_call.1} parent=11 // pred_check_branch
          %171 = sbr.rel (%p169) target = $region20
        $region19: #{tpu_custom_call.1} parent=11 // pred_region
          _
        $region20: #{tpu_custom_call.1} parent=11 // pred_fallthru
          _
      $region12: #{tpu_custom_call.1} parent=5 // pred_fallthru
        _
      %p172 = scmp.lt.s32.totalorder %s21, 2
      // Predicated region
      $region21: #{tpu_custom_call.1} parent=5 // pred_check
        %p173 = pneg %p172
      $region22: #{tpu_custom_call.1} parent=5 // pred_check_branch
        %175 = sbr.rel (%p173) target = $region24
      $region23: #{tpu_custom_call.1} parent=5 // pred_region
        // Predicated region
        $region25: #{tpu_custom_call.1} parent=23 // pred_check
          %p176 = pneg %p41
        $region26: #{tpu_custom_call.1} parent=23 // pred_check_branch
          %178 = sbr.rel (%p176) target = $region28
        $region27: #{tpu_custom_call.1} parent=23 // pred_region
          %s179 = sand.u32 %s31, 1
          %s180 = scalar_lea.sflag [#allocation3], %s179
          %s181 = sand.u32 %s31, 1
          %s182 = smul.addr %s181, 128
          %s183 = scalar_lea.vmem [#allocation2], %s182
          %s184 = smul.u32 32, %s21
          %s186 = ssub.s32 2048, 2048
          %187 = vsyncadd %s180, %s186
          %s188 = smul.addr %s184, 64
          %s189 = scalar_lea.hbm %s0, %s188
          %s190 = sshll.u32 %s183, 4
          %s191 = int_to_ptr.vmem [resolvable:$true] %s190
          %196 = dma.hbm_to_vmem [thread:$0]  %s189, 2048, %s191, %s180, 64, 64, 4
        $region28: #{tpu_custom_call.1} parent=23 // pred_fallthru
          _
      $region24: #{tpu_custom_call.1} parent=5 // pred_fallthru
        _
      %p197 = scmp.le.s32.totalorder 1, %s21
      %p198 = scmp.lt.s32.totalorder %s21, 3
      %p199 = pnand %p197, %p198
      %p200 = pneg %p199
      // Predicated region
      $region29: #{tpu_custom_call.1} parent=5 // pred_check
        _
      $region30: #{tpu_custom_call.1} parent=5 // pred_check_branch
        %202 = sbr.rel (%p199) target = $region32
      $region31: #{tpu_custom_call.1} parent=5 // pred_region
        %s203 = ssub.s32 %s21, 1
        %s204 = sand.u32 %s34, 1
        %s205 = scalar_lea.sflag [#allocation3], %s204
        %s206 = sand.u32 %s34, 1
        %s207 = smul.addr %s206, 128
        %s208 = scalar_lea.vmem [#allocation2], %s207
        // Predicated region
        $region33: #{tpu_custom_call.1} parent=31 // pred_check
          %p209 = pneg %p47
        $region34: #{tpu_custom_call.1} parent=31 // pred_check_branch
          %211 = sbr.rel (%p209) target = $region36
        $region35: #{tpu_custom_call.1} parent=31 // pred_region
          %212 = dma.done %s205, 2048
        $region36: #{tpu_custom_call.1} parent=31 // pred_fallthru
          _
        // Predicated region
        $region37: #{tpu_custom_call.1} parent=31 // pred_check
          %p213 = pneg %p68
        $region38: #{tpu_custom_call.1} parent=31 // pred_check_branch
          %215 = sbr.rel (%p213) target = $region40
        $region39: #{tpu_custom_call.1} parent=31 // pred_region
          %216 = dma.done [#allocation6], 2048
        $region40: #{tpu_custom_call.1} parent=31 // pred_fallthru
          _
        %s217 = sand.u32 %s34, 1
        %s218 = scalar_lea.sflag [#allocation3], %s217
        %s219 = sand.u32 %s34, 1
        %s220 = smul.addr %s219, 128
        %s221 = scalar_lea.vmem [#allocation2], %s220
        %p222 = pneg %p47
        %p223 = pneg %p44
        %p224 = pneg %p68
        %p225 = pneg %p65
        %p226 = pneg %p89
        %p227 = pneg %p86
        %p228 = pneg %p115
        %p229 = pneg %p112
        %s230 = sand.u32 %s102, 1
        %s231 = scalar_lea.sflag [#allocation4], %s230
        %s232 = sand.u32 %s102, 1
        %s233 = smul.addr %s232, 128
        %s234 = scalar_lea.vmem [#allocation7], %s233
        %p235 = pneg %p141
        %p236 = pneg %p138
        %s237 = sand.u32 %s128, 1
        %s238 = scalar_lea.sflag [#allocation9], %s237
        %s239 = sand.u32 %s128, 1
        %s240 = smul.addr %s239, 128
        %s241 = scalar_lea.vmem [#allocation8], %s240
        %s242 = smul.u32 32, %s26
        %s243 = smul.u32 32, %s26
        %s244 = smul.u32 32, %s26
        %v246 = vld [vmem:[%s208] sm:$0xf]
        %v247 = vld [vmem:[%s208 + $0x4] sm:$0xf]
        %v248 = vld [vmem:[%s208 + $0x8] sm:$0xf]
        %v249 = vld [vmem:[%s208 + $0xc] sm:$0xf]
        %v250 = vld [vmem:[%s208 + $0x10] sm:$0xf]
        %v251 = vld [vmem:[%s208 + $0x14] sm:$0xf]
        %v252 = vld [vmem:[%s208 + $0x18] sm:$0xf]
        %v253 = vld [vmem:[%s208 + $0x1c] sm:$0xf]
        %v254 = vld [vmem:[%s208 + $0x20] sm:$0xf]
        %v255 = vld [vmem:[%s208 + $0x24] sm:$0xf]
        %v256 = vld [vmem:[%s208 + $0x28] sm:$0xf]
        %v257 = vld [vmem:[%s208 + $0x2c] sm:$0xf]
        %v258 = vld [vmem:[%s208 + $0x30] sm:$0xf]
        %v259 = vld [vmem:[%s208 + $0x34] sm:$0xf]
        %v260 = vld [vmem:[%s208 + $0x38] sm:$0xf]
        %v261 = vld [vmem:[%s208 + $0x3c] sm:$0xf]
        %v262 = vld [vmem:[%s208 + $0x40] sm:$0xf]
        %v263 = vld [vmem:[%s208 + $0x44] sm:$0xf]
        %v264 = vld [vmem:[%s208 + $0x48] sm:$0xf]
        %v265 = vld [vmem:[%s208 + $0x4c] sm:$0xf]
        %v266 = vld [vmem:[%s208 + $0x50] sm:$0xf]
        %v267 = vld [vmem:[%s208 + $0x54] sm:$0xf]
        %v268 = vld [vmem:[%s208 + $0x58] sm:$0xf]
        %v269 = vld [vmem:[%s208 + $0x5c] sm:$0xf]
        %v270 = vld [vmem:[%s208 + $0x60] sm:$0xf]
        %v271 = vld [vmem:[%s208 + $0x64] sm:$0xf]
        %v272 = vld [vmem:[%s208 + $0x68] sm:$0xf]
        %v273 = vld [vmem:[%s208 + $0x6c] sm:$0xf]
        %v274 = vld [vmem:[%s208 + $0x70] sm:$0xf]
        %v275 = vld [vmem:[%s208 + $0x74] sm:$0xf]
        %v276 = vld [vmem:[%s208 + $0x78] sm:$0xf]
        %v277 = vld [vmem:[%s208 + $0x7c] sm:$0xf]
        %v278 = vld [vmem:[#allocation5] sm:$0xff]
        %v279 = vld [vmem:[#allocation5 + $0x8] sm:$0xff]
        %v280 = vld [vmem:[#allocation5 + $0x10] sm:$0xff]
        %v281 = vld [vmem:[#allocation5 + $0x18] sm:$0xff]
        %v282 = vld [vmem:[#allocation5 + $0x20] sm:$0xff]
        %v283 = vld [vmem:[#allocation5 + $0x28] sm:$0xff]
        %v284 = vld [vmem:[#allocation5 + $0x30] sm:$0xff]
        %v285 = vld [vmem:[#allocation5 + $0x38] sm:$0xff]
        %v286 = vld [vmem:[#allocation5 + $0x40] sm:$0xff]
        %v287 = vld [vmem:[#allocation5 + $0x48] sm:$0xff]
        %v288 = vld [vmem:[#allocation5 + $0x50] sm:$0xff]
        %v289 = vld [vmem:[#allocation5 + $0x58] sm:$0xff]
        %v290 = vld [vmem:[#allocation5 + $0x60] sm:$0xff]
        %v291 = vld [vmem:[#allocation5 + $0x68] sm:$0xff]
        %v292 = vld [vmem:[#allocation5 + $0x70] sm:$0xff]
        %v293 = vld [vmem:[#allocation5 + $0x78] sm:$0xff]
        %v326 = vunpack.c.l.b16 %v246
        %v327 = vunpack.c.l.b16 %v247
        %v328 = vunpack.c.l.b16 %v248
        %v329 = vunpack.c.l.b16 %v249
        %v330 = vunpack.c.l.b16 %v250
        %v331 = vunpack.c.l.b16 %v251
        %v332 = vunpack.c.l.b16 %v252
        %v333 = vunpack.c.l.b16 %v253
        %v334 = vunpack.c.l.b16 %v254
        %v335 = vunpack.c.l.b16 %v255
        %v336 = vunpack.c.l.b16 %v256
        %v337 = vunpack.c.l.b16 %v257
        %v338 = vunpack.c.l.b16 %v258
        %v339 = vunpack.c.l.b16 %v259
        %v340 = vunpack.c.l.b16 %v260
        %v341 = vunpack.c.l.b16 %v261
        %v342 = vunpack.c.l.b16 %v262
        %v343 = vunpack.c.l.b16 %v263
        %v344 = vunpack.c.l.b16 %v264
        %v345 = vunpack.c.l.b16 %v265
        %v346 = vunpack.c.l.b16 %v266
        %v347 = vunpack.c.l.b16 %v267
        %v348 = vunpack.c.l.b16 %v268
        %v349 = vunpack.c.l.b16 %v269
        %v350 = vunpack.c.l.b16 %v270
        %v351 = vunpack.c.l.b16 %v271
        %v352 = vunpack.c.l.b16 %v272
        %v353 = vunpack.c.l.b16 %v273
        %v354 = vunpack.c.l.b16 %v274
        %v355 = vunpack.c.l.b16 %v275
        %v356 = vunpack.c.l.b16 %v276
        %v357 = vunpack.c.l.b16 %v277
        %v358 = vpack.c.b16 %v327, %v326
        %v359 = vpack.c.b16 %v329, %v328
        %v360 = vpack.c.b16 %v331, %v330
        %v361 = vpack.c.b16 %v333, %v332
        %v362 = vpack.c.b16 %v335, %v334
        %v363 = vpack.c.b16 %v337, %v336
        %v364 = vpack.c.b16 %v339, %v338
        %v365 = vpack.c.b16 %v341, %v340
        %v366 = vpack.c.b16 %v343, %v342
        %v367 = vpack.c.b16 %v345, %v344
        %v368 = vpack.c.b16 %v347, %v346
        %v369 = vpack.c.b16 %v349, %v348
        %v370 = vpack.c.b16 %v351, %v350
        %v371 = vpack.c.b16 %v353, %v352
        %v372 = vpack.c.b16 %v355, %v354
        %v373 = vpack.c.b16 %v357, %v356
        %v406 = vunpack.c.l.b16 %v278
        %v407 = vunpack.c.h.b16 %v278
        %v408 = vunpack.c.l.b16 %v279
        %v409 = vunpack.c.h.b16 %v279
        %v410 = vunpack.c.l.b16 %v280
        %v411 = vunpack.c.h.b16 %v280
        %v412 = vunpack.c.l.b16 %v281
        %v413 = vunpack.c.h.b16 %v281
        %v414 = vunpack.c.l.b16 %v282
        %v415 = vunpack.c.h.b16 %v282
        %v416 = vunpack.c.l.b16 %v283
        %v417 = vunpack.c.h.b16 %v283
        %v418 = vunpack.c.l.b16 %v284
        %v419 = vunpack.c.h.b16 %v284
        %v420 = vunpack.c.l.b16 %v285
        %v421 = vunpack.c.h.b16 %v285
        %v422 = vunpack.c.l.b16 %v286
        %v423 = vunpack.c.h.b16 %v286
        %v424 = vunpack.c.l.b16 %v287
        %v425 = vunpack.c.h.b16 %v287
        %v426 = vunpack.c.l.b16 %v288
        %v427 = vunpack.c.h.b16 %v288
        %v428 = vunpack.c.l.b16 %v289
        %v429 = vunpack.c.h.b16 %v289
        %v430 = vunpack.c.l.b16 %v290
        %v431 = vunpack.c.h.b16 %v290
        %v432 = vunpack.c.l.b16 %v291
        %v433 = vunpack.c.h.b16 %v291
        %v434 = vunpack.c.l.b16 %v292
        %v435 = vunpack.c.h.b16 %v292
        %v436 = vunpack.c.l.b16 %v293
        %v437 = vunpack.c.h.b16 %v293
        %v438 = vpack.c.b16 %v408, %v406
        %v439 = vpack.c.b16 %v409, %v407
        %v440 = vpack.c.b16 %v412, %v410
        %v441 = vpack.c.b16 %v413, %v411
        %v442 = vpack.c.b16 %v416, %v414
        %v443 = vpack.c.b16 %v417, %v415
        %v444 = vpack.c.b16 %v420, %v418
        %v445 = vpack.c.b16 %v421, %v419
        %v446 = vpack.c.b16 %v424, %v422
        %v447 = vpack.c.b16 %v425, %v423
        %v448 = vpack.c.b16 %v428, %v426
        %v449 = vpack.c.b16 %v429, %v427
        %v450 = vpack.c.b16 %v432, %v430
        %v451 = vpack.c.b16 %v433, %v431
        %v452 = vpack.c.b16 %v436, %v434
        %v453 = vpack.c.b16 %v437, %v435
        %470 = vmatprep.subr.bf16.mxu0 %v453
        %471 = vmatpush1.bf16.msra.mxu0 %v452
        %472 = vmatprep.subr.bf16.mxu0 %v451
        %473 = vmatpush1.bf16.msra.mxu0 %v450
        %474 = vmatprep.subr.bf16.mxu0 %v449
        %475 = vmatpush1.bf16.msra.mxu0 %v448
        %476 = vmatprep.subr.bf16.mxu0 %v447
        %477 = vmatpush1.bf16.msra.mxu0 %v446
        %478 = vmatprep.subr.bf16.mxu0 %v445
        %479 = vmatpush1.bf16.msra.mxu0 %v444
        %480 = vmatprep.subr.bf16.mxu0 %v443
        %481 = vmatpush1.bf16.msra.mxu0 %v442
        %482 = vmatprep.subr.bf16.mxu0 %v441
        %483 = vmatpush1.bf16.msra.mxu0 %v440
        %484 = vmatprep.subr.bf16.mxu0 %v439
        %485 = vmatpush1.bf16.msra.mxu0 %v438
        %486 = vmatprep.subr.bf16.mxu0 0
        %487 = vmatpush2.bf16.msra.mxu0 0
        %488 = vmatprep.subr.bf16.mxu0 0
        %489 = vmatpush2.bf16.msra.mxu0 0
        %490 = vmatprep.subr.bf16.mxu0 0
        %491 = vmatpush2.bf16.msra.mxu0 0
        %492 = vmatprep.subr.bf16.mxu0 0
        %493 = vmatpush2.bf16.msra.mxu0 0
        %494 = vmatprep.subr.bf16.mxu0 0
        %495 = vmatpush2.bf16.msra.mxu0 0
        %496 = vmatprep.subr.bf16.mxu0 0
        %497 = vmatpush2.bf16.msra.mxu0 0
        %498 = vmatprep.subr.bf16.mxu0 0
        %499 = vmatpush2.bf16.msra.mxu0 0
        %500 = vmatprep.subr.bf16.mxu0 0
        %501 = vmatpush2.bf16.msra.mxu0 0
        %502 = vmatprep.mubr.bf16.mxu0 0
        %503 = vmatmul.mubr.bf16.gmra.mxu0 %v358
        %v504 = vpop.f32.mrf.mxu0
        %v505 = vadd.f32 0.0, %v504
        %v506 = vpop.f32.mrf.mxu0
        %v507 = vadd.f32 0.0, %v506
        %v508 = vpop.f32.mrf.mxu0
        %v509 = vadd.f32 0.0, %v508
        %v510 = vpop.f32.mrf.mxu0
        %v511 = vadd.f32 0.0, %v510
        %512 = vmatprep.mubr.bf16.mxu0 0
        %513 = vmatmul.mubr.bf16.gmra.mxu0 %v359
        %v514 = vpop.f32.mrf.mxu0
        %v515 = vadd.f32 0.0, %v514
        %v516 = vpop.f32.mrf.mxu0
        %v517 = vadd.f32 0.0, %v516
        %v518 = vpop.f32.mrf.mxu0
        %v519 = vadd.f32 0.0, %v518
        %v520 = vpop.f32.mrf.mxu0
        %v521 = vadd.f32 0.0, %v520
        %522 = vmatprep.mubr.bf16.mxu0 0
        %523 = vmatmul.mubr.bf16.gmra.mxu0 %v360
        %v524 = vpop.f32.mrf.mxu0
        %v525 = vadd.f32 0.0, %v524
        %v526 = vpop.f32.mrf.mxu0
        %v527 = vadd.f32 0.0, %v526
        %v528 = vpop.f32.mrf.mxu0
        %v529 = vadd.f32 0.0, %v528
        %v530 = vpop.f32.mrf.mxu0
        %v531 = vadd.f32 0.0, %v530
        %532 = vmatprep.mubr.bf16.mxu0 0
        %533 = vmatmul.mubr.bf16.gmra.mxu0 %v361
        %v534 = vpop.f32.mrf.mxu0
        %v535 = vadd.f32 0.0, %v534
        %v536 = vpop.f32.mrf.mxu0
        %v537 = vadd.f32 0.0, %v536
        %v538 = vpop.f32.mrf.mxu0
        %v539 = vadd.f32 0.0, %v538
        %v540 = vpop.f32.mrf.mxu0
        %v541 = vadd.f32 0.0, %v540
        %542 = vmatprep.mubr.bf16.mxu0 0
        %543 = vmatmul.mubr.bf16.gmra.mxu0 %v362
        %v544 = vpop.f32.mrf.mxu0
        %v545 = vadd.f32 0.0, %v544
        %v546 = vpop.f32.mrf.mxu0
        %v547 = vadd.f32 0.0, %v546
        %v548 = vpop.f32.mrf.mxu0
        %v549 = vadd.f32 0.0, %v548
        %v550 = vpop.f32.mrf.mxu0
        %v551 = vadd.f32 0.0, %v550
        %552 = vmatprep.mubr.bf16.mxu0 0
        %553 = vmatmul.mubr.bf16.gmra.mxu0 %v363
        %v554 = vpop.f32.mrf.mxu0
        %v555 = vadd.f32 0.0, %v554
        %v556 = vpop.f32.mrf.mxu0
        %v557 = vadd.f32 0.0, %v556
        %v558 = vpop.f32.mrf.mxu0
        %v559 = vadd.f32 0.0, %v558
        %v560 = vpop.f32.mrf.mxu0
        %v561 = vadd.f32 0.0, %v560
        %562 = vmatprep.mubr.bf16.mxu0 0
        %563 = vmatmul.mubr.bf16.gmra.mxu0 %v364
        %v564 = vpop.f32.mrf.mxu0
        %v565 = vadd.f32 0.0, %v564
        %v566 = vpop.f32.mrf.mxu0
        %v567 = vadd.f32 0.0, %v566
        %v568 = vpop.f32.mrf.mxu0
        %v569 = vadd.f32 0.0, %v568
        %v570 = vpop.f32.mrf.mxu0
        %v571 = vadd.f32 0.0, %v570
        %572 = vmatprep.mubr.bf16.mxu0 0
        %573 = vmatmul.mubr.bf16.gmra.mxu0 %v365
        %v574 = vpop.f32.mrf.mxu0
        %v575 = vadd.f32 0.0, %v574
        %v576 = vpop.f32.mrf.mxu0
        %v577 = vadd.f32 0.0, %v576
        %v578 = vpop.f32.mrf.mxu0
        %v579 = vadd.f32 0.0, %v578
        %v580 = vpop.f32.mrf.mxu0
        %v581 = vadd.f32 0.0, %v580
        %582 = vmatprep.mubr.bf16.mxu0 0
        %583 = vmatmul.mubr.bf16.gmra.mxu0 %v366
        %v584 = vpop.f32.mrf.mxu0
        %v585 = vadd.f32 0.0, %v584
        %v586 = vpop.f32.mrf.mxu0
        %v587 = vadd.f32 0.0, %v586
        %v588 = vpop.f32.mrf.mxu0
        %v589 = vadd.f32 0.0, %v588
        %v590 = vpop.f32.mrf.mxu0
        %v591 = vadd.f32 0.0, %v590
        %592 = vmatprep.mubr.bf16.mxu0 0
        %593 = vmatmul.mubr.bf16.gmra.mxu0 %v367
        %v594 = vpop.f32.mrf.mxu0
        %v595 = vadd.f32 0.0, %v594
        %v596 = vpop.f32.mrf.mxu0
        %v597 = vadd.f32 0.0, %v596
        %v598 = vpop.f32.mrf.mxu0
        %v599 = vadd.f32 0.0, %v598
        %v600 = vpop.f32.mrf.mxu0
        %v601 = vadd.f32 0.0, %v600
        %602 = vmatprep.mubr.bf16.mxu0 0
        %603 = vmatmul.mubr.bf16.gmra.mxu0 %v368
        %v604 = vpop.f32.mrf.mxu0
        %v605 = vadd.f32 0.0, %v604
        %v606 = vpop.f32.mrf.mxu0
        %v607 = vadd.f32 0.0, %v606
        %v608 = vpop.f32.mrf.mxu0
        %v609 = vadd.f32 0.0, %v608
        %v610 = vpop.f32.mrf.mxu0
        %v611 = vadd.f32 0.0, %v610
        %612 = vmatprep.mubr.bf16.mxu0 0
        %613 = vmatmul.mubr.bf16.gmra.mxu0 %v369
        %v614 = vpop.f32.mrf.mxu0
        %v615 = vadd.f32 0.0, %v614
        %v616 = vpop.f32.mrf.mxu0
        %v617 = vadd.f32 0.0, %v616
        %v618 = vpop.f32.mrf.mxu0
        %v619 = vadd.f32 0.0, %v618
        %v620 = vpop.f32.mrf.mxu0
        %v621 = vadd.f32 0.0, %v620
        %622 = vmatprep.mubr.bf16.mxu0 0
        %623 = vmatmul.mubr.bf16.gmra.mxu0 %v370
        %v624 = vpop.f32.mrf.mxu0
        %v625 = vadd.f32 0.0, %v624
        %v626 = vpop.f32.mrf.mxu0
        %v627 = vadd.f32 0.0, %v626
        %v628 = vpop.f32.mrf.mxu0
        %v629 = vadd.f32 0.0, %v628
        %v630 = vpop.f32.mrf.mxu0
        %v631 = vadd.f32 0.0, %v630
        %632 = vmatprep.mubr.bf16.mxu0 0
        %633 = vmatmul.mubr.bf16.gmra.mxu0 %v371
        %v634 = vpop.f32.mrf.mxu0
        %v635 = vadd.f32 0.0, %v634
        %v636 = vpop.f32.mrf.mxu0
        %v637 = vadd.f32 0.0, %v636
        %v638 = vpop.f32.mrf.mxu0
        %v639 = vadd.f32 0.0, %v638
        %v640 = vpop.f32.mrf.mxu0
        %v641 = vadd.f32 0.0, %v640
        %642 = vmatprep.mubr.bf16.mxu0 0
        %643 = vmatmul.mubr.bf16.gmra.mxu0 %v372
        %v644 = vpop.f32.mrf.mxu0
        %v645 = vadd.f32 0.0, %v644
        %v646 = vpop.f32.mrf.mxu0
        %v647 = vadd.f32 0.0, %v646
        %v648 = vpop.f32.mrf.mxu0
        %v649 = vadd.f32 0.0, %v648
        %v650 = vpop.f32.mrf.mxu0
        %v651 = vadd.f32 0.0, %v650
        %652 = vmatprep.mubr.bf16.mxu0 0
        %653 = vmatmul.mubr.bf16.gmra.mxu0 %v373
        %v654 = vpop.f32.mrf.mxu0
        %v655 = vadd.f32 0.0, %v654
        %v656 = vpop.f32.mrf.mxu0
        %v657 = vadd.f32 0.0, %v656
        %v658 = vpop.f32.mrf.mxu0
        %v659 = vadd.f32 0.0, %v658
        %v660 = vpop.f32.mrf.mxu0
        %v661 = vadd.f32 0.0, %v660
        %662 = vdwg.mxu0
        %v663 = vpack.c.bf16 %v509, %v505
        %v664 = vpack.c.bf16 %v519, %v515
        %v665 = vpack.c.bf16 %v529, %v525
        %v666 = vpack.c.bf16 %v539, %v535
        %v667 = vpack.c.bf16 %v549, %v545
        %v668 = vpack.c.bf16 %v559, %v555
        %v669 = vpack.c.bf16 %v569, %v565
        %v670 = vpack.c.bf16 %v579, %v575
        %v671 = vpack.c.bf16 %v589, %v585
        %v672 = vpack.c.bf16 %v599, %v595
        %v673 = vpack.c.bf16 %v609, %v605
        %v674 = vpack.c.bf16 %v619, %v615
        %v675 = vpack.c.bf16 %v629, %v625
        %v676 = vpack.c.bf16 %v639, %v635
        %v677 = vpack.c.bf16 %v649, %v645
        %v678 = vpack.c.bf16 %v659, %v655
        %v695 = vunpack.c.l.b16 %v663
        %v696 = vunpack.c.h.b16 %v663
        %v697 = vunpack.c.l.b16 %v664
        %v698 = vunpack.c.h.b16 %v664
        %v699 = vunpack.c.l.b16 %v665
        %v700 = vunpack.c.h.b16 %v665
        %v701 = vunpack.c.l.b16 %v666
        %v702 = vunpack.c.h.b16 %v666
        %v703 = vunpack.c.l.b16 %v667
        %v704 = vunpack.c.h.b16 %v667
        %v705 = vunpack.c.l.b16 %v668
        %v706 = vunpack.c.h.b16 %v668
        %v707 = vunpack.c.l.b16 %v669
        %v708 = vunpack.c.h.b16 %v669
        %v709 = vunpack.c.l.b16 %v670
        %v710 = vunpack.c.h.b16 %v670
        %v711 = vunpack.c.l.b16 %v671
        %v712 = vunpack.c.h.b16 %v671
        %v713 = vunpack.c.l.b16 %v672
        %v714 = vunpack.c.h.b16 %v672
        %v715 = vunpack.c.l.b16 %v673
        %v716 = vunpack.c.h.b16 %v673
        %v717 = vunpack.c.l.b16 %v674
        %v718 = vunpack.c.h.b16 %v674
        %v719 = vunpack.c.l.b16 %v675
        %v720 = vunpack.c.h.b16 %v675
        %v721 = vunpack.c.l.b16 %v676
        %v722 = vunpack.c.h.b16 %v676
        %v723 = vunpack.c.l.b16 %v677
        %v724 = vunpack.c.h.b16 %v677
        %v725 = vunpack.c.l.b16 %v678
        %v726 = vunpack.c.h.b16 %v678
        %v727 = vpack.c.b16 %v695, %v695
        %v728 = vpack.c.b16 %v696, %v696
        %v729 = vpack.c.b16 %v697, %v697
        %v730 = vpack.c.b16 %v698, %v698
        %v731 = vpack.c.b16 %v699, %v699
        %v732 = vpack.c.b16 %v700, %v700
        %v733 = vpack.c.b16 %v701, %v701
        %v734 = vpack.c.b16 %v702, %v702
        %v735 = vpack.c.b16 %v703, %v703
        %v736 = vpack.c.b16 %v704, %v704
        %v737 = vpack.c.b16 %v705, %v705
        %v738 = vpack.c.b16 %v706, %v706
        %v739 = vpack.c.b16 %v707, %v707
        %v740 = vpack.c.b16 %v708, %v708
        %v741 = vpack.c.b16 %v709, %v709
        %v742 = vpack.c.b16 %v710, %v710
        %v743 = vpack.c.b16 %v711, %v711
        %v744 = vpack.c.b16 %v712, %v712
        %v745 = vpack.c.b16 %v713, %v713
        %v746 = vpack.c.b16 %v714, %v714
        %v747 = vpack.c.b16 %v715, %v715
        %v748 = vpack.c.b16 %v716, %v716
        %v749 = vpack.c.b16 %v717, %v717
        %v750 = vpack.c.b16 %v718, %v718
        %v751 = vpack.c.b16 %v719, %v719
        %v752 = vpack.c.b16 %v720, %v720
        %v753 = vpack.c.b16 %v721, %v721
        %v754 = vpack.c.b16 %v722, %v722
        %v755 = vpack.c.b16 %v723, %v723
        %v756 = vpack.c.b16 %v724, %v724
        %v757 = vpack.c.b16 %v725, %v725
        %v758 = vpack.c.b16 %v726, %v726
        %791 = vst [vmem:[%s234] sm:$0xf] %v727
        %792 = vst [vmem:[%s234 + $0x4] sm:$0xf] %v728
        %793 = vst [vmem:[%s234 + $0x8] sm:$0xf] %v729
        %794 = vst [vmem:[%s234 + $0xc] sm:$0xf] %v730
        %795 = vst [vmem:[%s234 + $0x10] sm:$0xf] %v731
        %796 = vst [vmem:[%s234 + $0x14] sm:$0xf] %v732
        %797 = vst [vmem:[%s234 + $0x18] sm:$0xf] %v733
        %798 = vst [vmem:[%s234 + $0x1c] sm:$0xf] %v734
        %799 = vst [vmem:[%s234 + $0x20] sm:$0xf] %v735
        %800 = vst [vmem:[%s234 + $0x24] sm:$0xf] %v736
        %801 = vst [vmem:[%s234 + $0x28] sm:$0xf] %v737
        %802 = vst [vmem:[%s234 + $0x2c] sm:$0xf] %v738
        %803 = vst [vmem:[%s234 + $0x30] sm:$0xf] %v739
        %804 = vst [vmem:[%s234 + $0x34] sm:$0xf] %v740
        %805 = vst [vmem:[%s234 + $0x38] sm:$0xf] %v741
        %806 = vst [vmem:[%s234 + $0x3c] sm:$0xf] %v742
        %807 = vst [vmem:[%s234 + $0x40] sm:$0xf] %v743
        %808 = vst [vmem:[%s234 + $0x44] sm:$0xf] %v744
        %809 = vst [vmem:[%s234 + $0x48] sm:$0xf] %v745
        %810 = vst [vmem:[%s234 + $0x4c] sm:$0xf] %v746
        %811 = vst [vmem:[%s234 + $0x50] sm:$0xf] %v747
        %812 = vst [vmem:[%s234 + $0x54] sm:$0xf] %v748
        %813 = vst [vmem:[%s234 + $0x58] sm:$0xf] %v749
        %814 = vst [vmem:[%s234 + $0x5c] sm:$0xf] %v750
        %815 = vst [vmem:[%s234 + $0x60] sm:$0xf] %v751
        %816 = vst [vmem:[%s234 + $0x64] sm:$0xf] %v752
        %817 = vst [vmem:[%s234 + $0x68] sm:$0xf] %v753
        %818 = vst [vmem:[%s234 + $0x6c] sm:$0xf] %v754
        %819 = vst [vmem:[%s234 + $0x70] sm:$0xf] %v755
        %820 = vst [vmem:[%s234 + $0x74] sm:$0xf] %v756
        %821 = vst [vmem:[%s234 + $0x78] sm:$0xf] %v757
        %822 = vst [vmem:[%s234 + $0x7c] sm:$0xf] %v758
        %v823 = vld [vmem:[%s2] sm:$0x1]
        %v825 = vlaneseq
        %v826 = vshrl.u32 %v825, 7
        %v827 = vsub.s32 0, %v826
        %v828 = vrot.slane %v823, %v827
        %v830 = vadd.f32 %v507, %v828
        %v831 = vadd.f32 %v511, %v828
        %v832 = vadd.f32 %v517, %v828
        %v833 = vadd.f32 %v521, %v828
        %v834 = vadd.f32 %v527, %v828
        %v835 = vadd.f32 %v531, %v828
        %v836 = vadd.f32 %v537, %v828
        %v837 = vadd.f32 %v541, %v828
        %v838 = vadd.f32 %v547, %v828
        %v839 = vadd.f32 %v551, %v828
        %v840 = vadd.f32 %v557, %v828
        %v841 = vadd.f32 %v561, %v828
        %v842 = vadd.f32 %v567, %v828
        %v843 = vadd.f32 %v571, %v828
        %v844 = vadd.f32 %v577, %v828
        %v845 = vadd.f32 %v581, %v828
        %v846 = vadd.f32 %v587, %v828
        %v847 = vadd.f32 %v591, %v828
        %v848 = vadd.f32 %v597, %v828
        %v849 = vadd.f32 %v601, %v828
        %v850 = vadd.f32 %v607, %v828
        %v851 = vadd.f32 %v611, %v828
        %v852 = vadd.f32 %v617, %v828
        %v853 = vadd.f32 %v621, %v828
        %v854 = vadd.f32 %v627, %v828
        %v855 = vadd.f32 %v631, %v828
        %v856 = vadd.f32 %v637, %v828
        %v857 = vadd.f32 %v641, %v828
        %v858 = vadd.f32 %v647, %v828
        %v859 = vadd.f32 %v651, %v828
        %v860 = vadd.f32 %v657, %v828
        %v861 = vadd.f32 %v661, %v828
        %v862 = vpack.c.bf16 %v831, %v830
        %v863 = vpack.c.bf16 %v833, %v832
        %v864 = vpack.c.bf16 %v835, %v834
        %v865 = vpack.c.bf16 %v837, %v836
        %v866 = vpack.c.bf16 %v839, %v838
        %v867 = vpack.c.bf16 %v841, %v840
        %v868 = vpack.c.bf16 %v843, %v842
        %v869 = vpack.c.bf16 %v845, %v844
        %v870 = vpack.c.bf16 %v847, %v846
        %v871 = vpack.c.bf16 %v849, %v848
        %v872 = vpack.c.bf16 %v851, %v850
        %v873 = vpack.c.bf16 %v853, %v852
        %v874 = vpack.c.bf16 %v855, %v854
        %v875 = vpack.c.bf16 %v857, %v856
        %v876 = vpack.c.bf16 %v859, %v858
        %v877 = vpack.c.bf16 %v861, %v860
        %v894 = vunpack.c.l.b16 %v862
        %v895 = vunpack.c.h.b16 %v862
        %v896 = vunpack.c.l.b16 %v863
        %v897 = vunpack.c.h.b16 %v863
        %v898 = vunpack.c.l.b16 %v864
        %v899 = vunpack.c.h.b16 %v864
        %v900 = vunpack.c.l.b16 %v865
        %v901 = vunpack.c.h.b16 %v865
        %v902 = vunpack.c.l.b16 %v866
        %v903 = vunpack.c.h.b16 %v866
        %v904 = vunpack.c.l.b16 %v867
        %v905 = vunpack.c.h.b16 %v867
        %v906 = vunpack.c.l.b16 %v868
        %v907 = vunpack.c.h.b16 %v868
        %v908 = vunpack.c.l.b16 %v869
        %v909 = vunpack.c.h.b16 %v869
        %v910 = vunpack.c.l.b16 %v870
        %v911 = vunpack.c.h.b16 %v870
        %v912 = vunpack.c.l.b16 %v871
        %v913 = vunpack.c.h.b16 %v871
        %v914 = vunpack.c.l.b16 %v872
        %v915 = vunpack.c.h.b16 %v872
        %v916 = vunpack.c.l.b16 %v873
        %v917 = vunpack.c.h.b16 %v873
        %v918 = vunpack.c.l.b16 %v874
        %v919 = vunpack.c.h.b16 %v874
        %v920 = vunpack.c.l.b16 %v875
        %v921 = vunpack.c.h.b16 %v875
        %v922 = vunpack.c.l.b16 %v876
        %v923 = vunpack.c.h.b16 %v876
        %v924 = vunpack.c.l.b16 %v877
        %v925 = vunpack.c.h.b16 %v877
        %v926 = vpack.c.b16 %v894, %v894
        %v927 = vpack.c.b16 %v895, %v895
        %v928 = vpack.c.b16 %v896, %v896
        %v929 = vpack.c.b16 %v897, %v897
        %v930 = vpack.c.b16 %v898, %v898
        %v931 = vpack.c.b16 %v899, %v899
        %v932 = vpack.c.b16 %v900, %v900
        %v933 = vpack.c.b16 %v901, %v901
        %v934 = vpack.c.b16 %v902, %v902
        %v935 = vpack.c.b16 %v903, %v903
        %v936 = vpack.c.b16 %v904, %v904
        %v937 = vpack.c.b16 %v905, %v905
        %v938 = vpack.c.b16 %v906, %v906
        %v939 = vpack.c.b16 %v907, %v907
        %v940 = vpack.c.b16 %v908, %v908
        %v941 = vpack.c.b16 %v909, %v909
        %v942 = vpack.c.b16 %v910, %v910
        %v943 = vpack.c.b16 %v911, %v911
        %v944 = vpack.c.b16 %v912, %v912
        %v945 = vpack.c.b16 %v913, %v913
        %v946 = vpack.c.b16 %v914, %v914
        %v947 = vpack.c.b16 %v915, %v915
        %v948 = vpack.c.b16 %v916, %v916
        %v949 = vpack.c.b16 %v917, %v917
        %v950 = vpack.c.b16 %v918, %v918
        %v951 = vpack.c.b16 %v919, %v919
        %v952 = vpack.c.b16 %v920, %v920
        %v953 = vpack.c.b16 %v921, %v921
        %v954 = vpack.c.b16 %v922, %v922
        %v955 = vpack.c.b16 %v923, %v923
        %v956 = vpack.c.b16 %v924, %v924
        %v957 = vpack.c.b16 %v925, %v925
        %990 = vst [vmem:[%s241] sm:$0xf] %v926
        %991 = vst [vmem:[%s241 + $0x4] sm:$0xf] %v927
        %992 = vst [vmem:[%s241 + $0x8] sm:$0xf] %v928
        %993 = vst [vmem:[%s241 + $0xc] sm:$0xf] %v929
        %994 = vst [vmem:[%s241 + $0x10] sm:$0xf] %v930
        %995 = vst [vmem:[%s241 + $0x14] sm:$0xf] %v931
        %996 = vst [vmem:[%s241 + $0x18] sm:$0xf] %v932
        %997 = vst [vmem:[%s241 + $0x1c] sm:$0xf] %v933
        %998 = vst [vmem:[%s241 + $0x20] sm:$0xf] %v934
        %999 = vst [vmem:[%s241 + $0x24] sm:$0xf] %v935
        %1000 = vst [vmem:[%s241 + $0x28] sm:$0xf] %v936
        %1001 = vst [vmem:[%s241 + $0x2c] sm:$0xf] %v937
        %1002 = vst [vmem:[%s241 + $0x30] sm:$0xf] %v938
        %1003 = vst [vmem:[%s241 + $0x34] sm:$0xf] %v939
        %1004 = vst [vmem:[%s241 + $0x38] sm:$0xf] %v940
        %1005 = vst [vmem:[%s241 + $0x3c] sm:$0xf] %v941
        %1006 = vst [vmem:[%s241 + $0x40] sm:$0xf] %v942
        %1007 = vst [vmem:[%s241 + $0x44] sm:$0xf] %v943
        %1008 = vst [vmem:[%s241 + $0x48] sm:$0xf] %v944
        %1009 = vst [vmem:[%s241 + $0x4c] sm:$0xf] %v945
        %1010 = vst [vmem:[%s241 + $0x50] sm:$0xf] %v946
        %1011 = vst [vmem:[%s241 + $0x54] sm:$0xf] %v947
        %1012 = vst [vmem:[%s241 + $0x58] sm:$0xf] %v948
        %1013 = vst [vmem:[%s241 + $0x5c] sm:$0xf] %v949
        %1014 = vst [vmem:[%s241 + $0x60] sm:$0xf] %v950
        %1015 = vst [vmem:[%s241 + $0x64] sm:$0xf] %v951
        %1016 = vst [vmem:[%s241 + $0x68] sm:$0xf] %v952
        %1017 = vst [vmem:[%s241 + $0x6c] sm:$0xf] %v953
        %1018 = vst [vmem:[%s241 + $0x70] sm:$0xf] %v954
        %1019 = vst [vmem:[%s241 + $0x74] sm:$0xf] %v955
        %1020 = vst [vmem:[%s241 + $0x78] sm:$0xf] %v956
        %1021 = vst [vmem:[%s241 + $0x7c] sm:$0xf] %v957
        %s1022 = sand.u32 %s102, 1
        %s1023 = scalar_lea.sflag [#allocation4], %s1022
        %s1024 = sand.u32 %s102, 1
        %s1025 = smul.addr %s1024, 128
        %s1026 = scalar_lea.vmem [#allocation7], %s1025
        %s1027 = sand.u32 %s128, 1
        %s1028 = scalar_lea.sflag [#allocation9], %s1027
        %s1029 = sand.u32 %s128, 1
        %s1030 = smul.addr %s1029, 128
        %s1031 = scalar_lea.vmem [#allocation8], %s1030
        // Predicated region
        $region41: #{tpu_custom_call.1} parent=31 // pred_check
          %p1032 = pneg %p112
        $region42: #{tpu_custom_call.1} parent=31 // pred_check_branch
          %1034 = sbr.rel (%p1032) target = $region44
        $region43: #{tpu_custom_call.1} parent=31 // pred_region
          %s1035 = smul.u32 32, %s26
          %s1037 = ssub.s32 2048, 2048
          %1038 = vsyncadd %s1023, %s1037
          %s1039 = smul.addr %s1035, 64
          %s1040 = scalar_lea.hbm %s3, %s1039
          %s1041 = sshll.u32 %s1026, 4
          %s1042 = int_to_ptr.vmem [resolvable:$true] %s1041
          %1047 = dma.vmem_to_hbm [thread:$0]  %s1042, 2048, %s1040, %s1023, 64, 64, 4
        $region44: #{tpu_custom_call.1} parent=31 // pred_fallthru
          _
        // Predicated region
        $region45: #{tpu_custom_call.1} parent=31 // pred_check
          %p1048 = pneg %p138
        $region46: #{tpu_custom_call.1} parent=31 // pred_check_branch
          %1050 = sbr.rel (%p1048) target = $region48
        $region47: #{tpu_custom_call.1} parent=31 // pred_region
          %s1051 = smul.u32 32, %s26
          %s1053 = ssub.s32 2048, 2048
          %1054 = vsyncadd %s1028, %s1053
          %s1055 = smul.addr %s1051, 64
          %s1056 = scalar_lea.hbm %s4, %s1055
          %s1057 = sshll.u32 %s1031, 4
          %s1058 = int_to_ptr.vmem [resolvable:$true] %s1057
          %1063 = dma.vmem_to_hbm [thread:$0]  %s1058, 2048, %s1056, %s1028, 64, 64, 4
        $region48: #{tpu_custom_call.1} parent=31 // pred_fallthru
          _
      $region32: #{tpu_custom_call.1} parent=5 // pred_fallthru
        _
      %p1064 = scmp.le.s32.totalorder 2, %s21
      // Predicated region
      $region49: #{tpu_custom_call.1} parent=5 // pred_check
        %p1065 = pneg %p1064
      $region50: #{tpu_custom_call.1} parent=5 // pred_check_branch
        %1067 = sbr.rel (%p1065) target = $region52
      $region51: #{tpu_custom_call.1} parent=5 // pred_region
        %s1068 = ssub.s32 %s21, 2
        // Predicated region
        $region53: #{tpu_custom_call.1} parent=51 // pred_check
          %p1069 = pneg %p118
        $region54: #{tpu_custom_call.1} parent=51 // pred_check_branch
          %1071 = sbr.rel (%p1069) target = $region56
        $region55: #{tpu_custom_call.1} parent=51 // pred_region
          %s1072 = sand.u32 %s103, 1
          %s1073 = scalar_lea.sflag [#allocation4], %s1072
          %s1074 = sand.u32 %s103, 1
          %s1075 = smul.addr %s1074, 128
          %s1076 = scalar_lea.vmem [#allocation7], %s1075
          %1077 = dma.done %s1073, 2048
        $region56: #{tpu_custom_call.1} parent=51 // pred_fallthru
          _
        // Predicated region
        $region57: #{tpu_custom_call.1} parent=51 // pred_check
          %p1078 = pneg %p144
        $region58: #{tpu_custom_call.1} parent=51 // pred_check_branch
          %1080 = sbr.rel (%p1078) target = $region60
        $region59: #{tpu_custom_call.1} parent=51 // pred_region
          %s1081 = sand.u32 %s129, 1
          %s1082 = scalar_lea.sflag [#allocation9], %s1081
          %s1083 = sand.u32 %s129, 1
          %s1084 = smul.addr %s1083, 128
          %s1085 = scalar_lea.vmem [#allocation8], %s1084
          %1086 = dma.done %s1082, 2048
        $region60: #{tpu_custom_call.1} parent=51 // pred_fallthru
          _
      $region52: #{tpu_custom_call.1} parent=5 // pred_fallthru
        _
    $region6: #{tpu_custom_call.1} parent=1 // loop_footer
      %s25 = sadd.s32 1, %s21
    $region7: #{tpu_custom_call.1} parent=1 // loop_footer_branch
      %20 = sbr.rel target = $region3
    $region8: #{tpu_custom_call.1} parent=1 // loop_exit
      _
    %1087 = vsyncpa [#allocation3], 1
    %s1088 = scalar_lea.sflag [#allocation3], 1
    %1089 = vsyncpa %s1088, 1
    %1090 = vsyncpa [#allocation6], 1
    %1091 = vsyncpa [#allocation4], 1
    %s1092 = scalar_lea.sflag [#allocation4], 1
    %1093 = vsyncpa %s1092, 1
    %1094 = vsyncpa [#allocation9], 1
    %s1095 = scalar_lea.sflag [#allocation9], 1
    %1096 = vsyncpa %s1095, 1

</llo_original>
